<compile_context>
chip_gen: v6e
topology: v6e:2x2x1
jax: 0.10.0
libtpu: 0.0.40
codegen_flags: <defaults>
</compile_context>

<pallas_src>
import functools

import jax
import jax.numpy as jnp
from jax.experimental import pallas as pl
from jax.experimental.pallas import tpu as pltpu


def _round_up(x, m):
    return ((x + m - 1) // m) * m


def _vmem_limit_bytes(*buffer_bytes):
    # Every operand is (conservatively) double-buffered by the pipeline.
    need = 2 * sum(buffer_bytes)
    need = int(need * 1.25) + (4 << 20)          # headroom for compiler temps
    return max(32 << 20, min(need, 100 << 20))


# ---------------------------------------------------------------------------
# Pallas kernels
# ---------------------------------------------------------------------------
def _stft_mag_kernel(frames_ref, basis_ref, out_ref, *, half):
    """basis = [window*cos | window*sin] (fused); out = sqrt(re^2 + im^2)."""
    acc = jnp.dot(frames_ref[...], basis_ref[...],
                  preferred_element_type=jnp.float32)
    re = acc[:, :half]
    im = acc[:, half:]
    out_ref[...] = jnp.sqrt(re * re + im * im)


def _matmul_bias_act_kernel(cols_ref, w_ref, b_ref, out_ref, *, apply_act, slope):
    """out = leaky_relu(cols @ w + b)   (activation optional, fused)."""
    acc = jnp.dot(cols_ref[...], w_ref[...], preferred_element_type=jnp.float32)
    acc = acc + b_ref[...]                       # (1, Np) broadcast over rows
    if apply_act:
        acc = jnp.where(acc >= 0, acc, slope * acc)
    out_ref[...] = acc


# ---------------------------------------------------------------------------
# Pallas wrappers (M-tiled, weights/basis VMEM-resident via constant index_map)
# ---------------------------------------------------------------------------
def stft_magnitude_pallas(frames, fused_basis, n_freq_padded, *, tm=256):
    """frames: (M, K) f32; fused_basis: (Kp, 2*Fp) bf16 (already padded)."""
    M, K = frames.shape
    Kp, twoFp = fused_basis.shape
    Fp = n_freq_padded
    compute_dtype = fused_basis.dtype

    tm = min(tm, _round_up(M, 32))               # sublane-friendly for bf16/f32
    Mp = _round_up(M, tm)

    frames_p = jnp.zeros((Mp, Kp), compute_dtype)
    frames_p = frames_p.at[:M, :K].set(frames.astype(compute_dtype))

    itm = jnp.dtype(compute_dtype).itemsize
    limit = _vmem_limit_bytes(tm * Kp * itm, Kp * twoFp * itm, tm * Fp * 4)
    cost = pl.CostEstimate(
        flops=2 * Mp * Kp * twoFp,
        transcendentals=Mp * Fp,                 # sqrt
        bytes_accessed=Mp * Kp * itm + Kp * twoFp * itm + Mp * Fp * 4,
    )
    out = pl.pallas_call(
        functools.partial(_stft_mag_kernel, half=Fp),
        out_shape=jax.ShapeDtypeStruct((Mp, Fp), jnp.float32),
        grid=(Mp // tm,),
        in_specs=[
            pl.BlockSpec((tm, Kp), lambda i: (i, 0)),
            pl.BlockSpec((Kp, twoFp), lambda i: (0, 0)),   # VMEM-resident basis
        ],
        out_specs=pl.BlockSpec((tm, Fp), lambda i: (i, 0)),
        compiler_params=pltpu.CompilerParams(
            dimension_semantics=("parallel",),
            vmem_limit_bytes=limit),
        cost_estimate=cost,
    )(frames_p, fused_basis)
    return out[:M]                               # (M, Fp); caller slices F


def matmul_bias_act_pallas(cols, w2d, bias, *, apply_act, slope,
                           tm=256, compute_dtype=jnp.bfloat16):
    M, K = cols.shape
    _, N = w2d.shape
    Kp = _round_up(K, 128)
    Np = _round_up(N, 128)
    tm = min(tm, _round_up(M, 32))
    Mp = _round_up(M, tm)

    cols_p = jnp.zeros((Mp, Kp), compute_dtype).at[:M, :K].set(
        cols.astype(compute_dtype))
    w_p = jnp.zeros((Kp, Np), compute_dtype).at[:K, :N].set(
        w2d.astype(compute_dtype))
    b_p = jnp.zeros((1, Np), jnp.float32).at[0, :N].set(
        bias.astype(jnp.float32))

    itm = jnp.dtype(compute_dtype).itemsize
    limit = _vmem_limit_bytes(tm * Kp * itm, Kp * Np * itm, Np * 4, tm * Np * 4)
    cost = pl.CostEstimate(
        flops=2 * Mp * Kp * Np,
        transcendentals=0,
        bytes_accessed=Mp * Kp * itm + Kp * Np * itm + Mp * Np * 4,
    )
    kernel = functools.partial(_matmul_bias_act_kernel,
                               apply_act=apply_act, slope=slope)
    out = pl.pallas_call(
        kernel,
        out_shape=jax.ShapeDtypeStruct((Mp, Np), jnp.float32),
        grid=(Mp // tm,),
        in_specs=[
            pl.BlockSpec((tm, Kp), lambda i: (i, 0)),
            pl.BlockSpec((Kp, Np), lambda i: (0, 0)),      # VMEM-resident weight
            pl.BlockSpec((1, Np), lambda i: (0, 0)),       # VMEM-resident bias
        ],
        out_specs=pl.BlockSpec((tm, Np), lambda i: (i, 0)),
        compiler_params=pltpu.CompilerParams(
            dimension_semantics=("parallel",),
            vmem_limit_bytes=limit),
        cost_estimate=cost,
    )(cols_p, w_p, b_p)
    return out[:M, :N]


# ---------------------------------------------------------------------------
# Glue: NHWC im2col conv built on the Pallas matmul kernel
# ---------------------------------------------------------------------------
def conv2d_nhwc_pallas(x, w, b, stride, pad, *, apply_act, slope,
                       compute_dtype=jnp.bfloat16, tm=256):
    """x: (B, H, W, Cin) NHWC; w: (Cout, Cin, kh, kw) (PyTorch layout); b: (Cout,)."""
    B, H, W, C = x.shape
    O, _, kh, kw = w.shape
    sh, sw = stride
    ph, pw = pad
    Ho = (H + 2 * ph - kh) // sh + 1
    Wo = (W + 2 * pw - kw) // sw + 1

    # TODO(synk): the strided im2col taps cannot be expressed with BlockSpec
    # index_maps; folding them into the kernel would need a manual-DMA
    # (memory_space=pl.ANY) design. Gather kept in plain JAX for now.
    xp = jnp.pad(x, ((0, 0), (ph, ph), (pw, pw), (0, 0)))
    patches = []
    for i in range(kh):
        for j in range(kw):
            patches.append(xp[:, i:i + sh * Ho:sh, j:j + sw * Wo:sw, :])
    cols = jnp.stack(patches, axis=3)                    # (B, Ho, Wo, kh*kw, C)
    cols = cols.reshape(B * Ho * Wo, kh * kw * C)
    # Weight ordering must match the cols column order (i, j, c):
    w2d = w.transpose(2, 3, 1, 0).reshape(kh * kw * C, O)

    out = matmul_bias_act_pallas(cols, w2d, b, apply_act=apply_act,
                                 slope=slope, tm=tm, compute_dtype=compute_dtype)
    return out.reshape(B, Ho, Wo, O)                     # stays NHWC


# ---------------------------------------------------------------------------
# DiscriminatorR
# ---------------------------------------------------------------------------
class DiscriminatorRPallas:
    CONV_CFG = [
        # (kh, kw), (sh, sw), (ph, pw)
        ((7, 5), (2, 2), (3, 2)),
        ((5, 3), (2, 1), (2, 1)),
        ((5, 3), (2, 2), (2, 1)),
        ((3, 3), (2, 1), (1, 1)),
        ((3, 3), (2, 2), (1, 1)),
    ]

    def __init__(self, resolution, channels=64, in_channels=1, lrelu_slope=0.1,
                 key=None, compute_dtype=jnp.bfloat16, tile_m=256):
        self.resolution = resolution
        self.in_channels = in_channels
        self.lrelu_slope = float(lrelu_slope)
        self.channels = channels
        self.compute_dtype = compute_dtype
        self.tile_m = tile_m

        n_fft = resolution[0]
        n = jnp.arange(n_fft, dtype=jnp.float32)
        window = 0.5 - 0.5 * jnp.cos(2.0 * jnp.pi * n / n_fft)  # periodic hann

        # One-sided DFT basis with the window folded in, fused [cos | sin]
        # and padded so each half is lane-dense (multiple of 128).
        F = n_fft // 2 + 1
        self.n_freq = F
        freqs = jnp.arange(F, dtype=jnp.float32)
        ang = 2.0 * jnp.pi * n[:, None] * freqs[None, :] / n_fft   # (n_fft, F)
        cos_b = window[:, None] * jnp.cos(ang)
        sin_b = window[:, None] * jnp.sin(ang)

        Kp = _round_up(n_fft, 128)
        Fp = _round_up(F, 128)
        self.n_freq_padded = Fp
        fused = jnp.zeros((Kp, 2 * Fp), jnp.float32)
        fused = fused.at[:n_fft, :F].set(cos_b)
        fused = fused.at[:n_fft, Fp:Fp + F].set(sin_b)
        self.fused_basis = fused.astype(compute_dtype)

        # Deterministic synthetic parameters (weight_norm at init == plain weight).
        if key is None:
            key = jax.random.PRNGKey(0)
        self.weights, self.biases = [], []
        c_in = in_channels
        for (kh, kw), _, _ in self.CONV_CFG:
            key, kw_key, kb_key = jax.random.split(key, 3)
            self.weights.append(
                0.1 * jax.random.normal(kw_key, (channels, c_in, kh, kw), jnp.float32))
            self.biases.append(
                0.01 * jax.random.normal(kb_key, (channels,), jnp.float32))
            c_in = channels
        key, kw_key, kb_key = jax.random.split(key, 3)
        self.post_w = 0.1 * jax.random.normal(kw_key, (1, channels, 3, 3), jnp.float32)
        self.post_b = 0.01 * jax.random.normal(kb_key, (1,), jnp.float32)

    # -- torch.stft(..., center=True, return_complex=True).abs() -------------
    def spectrogram(self, x):
        """x: (B, L) -> magnitude spectrogram (B, n_fft//2+1, T)."""
        n_fft, hop, _ = self.resolution
        B, L = x.shape
        pad = n_fft // 2
        xp = jnp.pad(x, ((0, 0), (pad, pad)), mode="reflect")
        T = 1 + (xp.shape[1] - n_fft) // hop
        # TODO(synk): framing still materializes (B, T, n_fft) in HBM; folding
        # overlapping windows into the kernel needs element-offset index_maps
        # or a manual-DMA design.
        idx = jnp.arange(T)[:, None] * hop + jnp.arange(n_fft)[None, :]
        frames = xp[:, idx].reshape(B * T, n_fft).astype(jnp.float32)
        mag = stft_magnitude_pallas(frames, self.fused_basis,
                                    self.n_freq_padded, tm=self.tile_m)
        mag = mag[:, :self.n_freq]
        return mag.reshape(B, T, self.n_freq).transpose(0, 2, 1)   # (B, F, T)

    def __call__(self, x, cond_embedding_id=None):
        """x: (B, 1, L). Returns (flattened logits (B, H*W), fmap list in NCHW)."""
        fmap = []
        spec = self.spectrogram(jnp.squeeze(x, axis=1))   # (B, F, T)
        h = spec[..., None]                               # NHWC: (B, F, T, 1)
        for (w, b, (_, stride, pad)) in zip(self.weights, self.biases, self.CONV_CFG):
            h = conv2d_nhwc_pallas(h, w, b, stride, pad,
                                   apply_act=True, slope=self.lrelu_slope,
                                   compute_dtype=self.compute_dtype,
                                   tm=self.tile_m)
            fmap.append(h.transpose(0, 3, 1, 2))          # NCHW fmap like torch
        h = conv2d_nhwc_pallas(h, self.post_w, self.post_b, (1, 1), (1, 1),
                               apply_act=False, slope=self.lrelu_slope,
                               compute_dtype=self.compute_dtype, tm=self.tile_m)
        h = h.transpose(0, 3, 1, 2)                       # (B, 1, Ho, Wo)
        fmap.append(h)
        out = h.reshape(h.shape[0], -1)                   # flatten dims 1..-1
        return out, fmap


# ---------------------------------------------------------------------------
if __name__ == "__main__":
    # Small, module-consistent shapes: audio (B=2, 1, L=64), resolution (16, 4, 16)
    resolution = (16, 4, 16)   # (n_fft, hop_length, win_length) with win == n_fft
    B, L = 2, 64
    channels = 16

    key = jax.random.PRNGKey(0)
    k_x, k_p = jax.random.split(key)
    x = jax.random.normal(k_x, (B, 1, L), dtype=jnp.float32)

    disc = DiscriminatorRPallas(resolution, channels=channels, in_channels=1,
                                lrelu_slope=0.1, key=k_p)

    logits, fmap = disc(x)
    jax.block_until_ready(logits)
    for f in fmap:
        jax.block_until_ready(f)

    # basic shape sanity (spec: F=9, T=17 -> post-conv output (B, 1, 1, 3))
    assert logits.shape == (B, 3), logits.shape
    assert len(fmap) == 6
    print("KERNEL_OK")
</pallas_src>

<mosaic_0001>
module attributes {stable_mosaic.version = 11 : i64} {
  func.func @_stft_mag_kernel(%arg0: i32, %arg1: memref<64x128xbf16, #tpu.memory_space<vmem>>, %arg2: memref<128x256xbf16, #tpu.memory_space<vmem>>, %arg3: memref<64x128xf32, #tpu.memory_space<vmem>>) attributes {dimension_semantics = [#tpu.dimension_semantics<parallel>], iteration_bounds = array<i64: 1>, scalar_prefetch = 0 : i64, scratch_operands = 0 : i64, tpu.core_type = #tpu.core_type<tc>, window_params = [{transform_indices = @transform_0, window_bounds = array<i64: 64, 128>}, {pipeline_mode = #tpu.pipeline_mode<synchronous>, transform_indices = @transform_1, window_bounds = array<i64: 128, 256>}, {transform_indices = @transform_2, window_bounds = array<i64: 64, 128>}]} {
    %c0 = arith.constant 0 : index
    %c0_0 = arith.constant 0 : index
    %0 = vector.load %arg1[%c0, %c0_0] : memref<64x128xbf16, #tpu.memory_space<vmem>>, vector<64x128xbf16>
    %c0_1 = arith.constant 0 : index
    %c0_2 = arith.constant 0 : index
    %1 = vector.load %arg2[%c0_1, %c0_2] : memref<128x256xbf16, #tpu.memory_space<vmem>>, vector<128x256xbf16>
    %cst = arith.constant dense<0.000000e+00> : vector<64x256xf32>
    %2 = tpu.matmul %0, %1, %cst {dimension_numbers = #tpu.dot_dimension_numbers<[1], [0], [0], [1], [0, 0, 1, 1], [], []>} : vector<64x128xbf16>, vector<128x256xbf16>, vector<64x256xf32> -> vector<64x256xf32>
    %3 = vector.extract_strided_slice %2 {offsets = [0, 0], sizes = [64, 128], strides = [1, 1]} : vector<64x256xf32> to vector<64x128xf32>
    %4 = vector.extract_strided_slice %2 {offsets = [0, 128], sizes = [64, 128], strides = [1, 1]} : vector<64x256xf32> to vector<64x128xf32>
    %5 = arith.mulf %3, %3 : vector<64x128xf32>
    %6 = arith.mulf %4, %4 : vector<64x128xf32>
    %7 = arith.addf %5, %6 : vector<64x128xf32>
    %8 = math.sqrt %7 : vector<64x128xf32>
    %c0_3 = arith.constant 0 : index
    %c0_4 = arith.constant 0 : index
    %9 = vector.load %arg3[%c0_3, %c0_4] : memref<64x128xf32, #tpu.memory_space<vmem>>, vector<64x128xf32>
    tpu.vector_store %arg3[%c0_3, %c0_4], %8 {strides = array<i32>} : memref<64x128xf32, #tpu.memory_space<vmem>>, vector<64x128xf32>,
    return
  }
  func.func @transform_0(%arg0: i32) -> (i32, i32) {
    %c0_i32 = arith.constant 0 : i32
    %c0_i32_0 = arith.constant 0 : i32
    return %arg0, %c0_i32 : i32, i32
  }
  func.func @transform_1(%arg0: i32) -> (i32, i32) {
    %c0_i32 = arith.constant 0 : i32
    %c0_i32_0 = arith.constant 0 : i32
    %c0_i32_1 = arith.constant 0 : i32
    return %c0_i32, %c0_i32_0 : i32, i32
  }
  func.func @transform_2(%arg0: i32) -> (i32, i32) {
    %c0_i32 = arith.constant 0 : i32
    %c0_i32_0 = arith.constant 0 : i32
    return %arg0, %c0_i32 : i32, i32
  }
}

</mosaic_0001>

<llo_original>
// kernel: tpu_custom_call.1
$region0: #{tpu_custom_call.1}
  #allocation0 [shape = 'u32[]', space=smem, size = 0x4, offset = 0x4, fixed_abs, tag = 'smem constant byte address 0x4 - core index']
  #allocation1 [shape = 'u32[144,128]{1,0:T(1,128)}', space=vmem, size = 0x12000, scoped, tag = 'internal scratch']
  %s0 = inlined_call_operand.hbm [shape: bf16[64,128], index: 0, kind: input, shape index: {}]
  %s1 = inlined_call_operand.hbm [shape: bf16[128,256], index: 1, kind: input, shape index: {}]
  %s2 = inlined_call_operand.hbm [shape: f32[64,128], index: 2, kind: output, shape index: {}]
  %s3 = sld [smem:[#allocation0]]
  $region26: #{tpu_custom_call.1} parent=0
    _
  %s5 = ssub.s32 1, %s3
  %s6 = scalar_select 0, %s5, %s3
  $region1: #{tpu_custom_call.1} parent=0
    #allocation2 [shape = 'u8[16384]{0}', space=vmem, size = 0x4000, scoped, tag = 'input window, operand 0, single buffered']
    #allocation3 [shape = 's32[1]{0}', space=sflag, size = 0x4, scoped, tag = 'scoped memory for tpu_custom_call.1']
    #allocation4 [shape = 's32[1]{0}', space=sflag, size = 0x4, scoped, tag = 'scoped memory for tpu_custom_call.1']
    #allocation5 [shape = 'u8[65536]{0}', space=vmem, size = 0x10000, scoped, tag = 'input window, operand 1, single buffered']
    #allocation6 [shape = 's32[1]{0}', space=sflag, size = 0x4, scoped, tag = 'scoped memory for tpu_custom_call.1']
    #allocation7 [shape = 'u8[32768]{0}', space=vmem, size = 0x8000, scoped, tag = 'output window, operand 0, single buffered']
    %7 = vsyncpa [#allocation3], 0
    %8 = vsyncpa [#allocation6], 0
    %9 = vsyncpa [#allocation4], 0
    // Predicated region
    $region2: #{tpu_custom_call.1} parent=1 // pred_check
      _
    $region3: #{tpu_custom_call.1} parent=1 // pred_check_branch
      %11 = sbr.rel (0) target = $region5
    $region4: #{tpu_custom_call.1} parent=1 // pred_region
      %s13 = ssub.s32 512, 512
      %14 = vsyncadd [#allocation3], %s13
      %s15 = sshll.u32 [#allocation2], 4
      %s16 = int_to_ptr.vmem [resolvable:$true] %s15
      %21 = dma.hbm_to_vmem [thread:$0]  %s0, 512, %s16, [#allocation3], 64, 64, 4
    $region5: #{tpu_custom_call.1} parent=1 // pred_fallthru
      _
    // Predicated region
    $region6: #{tpu_custom_call.1} parent=1 // pred_check
      _
    $region7: #{tpu_custom_call.1} parent=1 // pred_check_branch
      %23 = sbr.rel (0) target = $region9
    $region8: #{tpu_custom_call.1} parent=1 // pred_region
      %s25 = ssub.s32 2048, 2048
      %26 = vsyncadd [#allocation6], %s25
      %s27 = sshll.u32 [#allocation5], 4
      %s28 = int_to_ptr.vmem [resolvable:$true] %s27
      %33 = dma.hbm_to_vmem [thread:$0]  %s1, 2048, %s28, [#allocation6], 128, 128, 8
    $region9: #{tpu_custom_call.1} parent=1 // pred_fallthru
      _
    // Predicated region
    $region10: #{tpu_custom_call.1} parent=1 // pred_check
      _
    $region11: #{tpu_custom_call.1} parent=1 // pred_check_branch
      %35 = sbr.rel (0) target = $region13
    $region12: #{tpu_custom_call.1} parent=1 // pred_region
      %36 = dma.done [#allocation3], 512
    $region13: #{tpu_custom_call.1} parent=1 // pred_fallthru
      _
    // Predicated region
    $region14: #{tpu_custom_call.1} parent=1 // pred_check
      _
    $region15: #{tpu_custom_call.1} parent=1 // pred_check_branch
      %38 = sbr.rel (0) target = $region17
    $region16: #{tpu_custom_call.1} parent=1 // pred_region
      %39 = dma.done [#allocation6], 2048
    $region17: #{tpu_custom_call.1} parent=1 // pred_fallthru
      _
    %v41 = vld [vmem:[#allocation2] sm:$0xf]
    %v42 = vld [vmem:[#allocation2 + $0x4] sm:$0xf]
    %v43 = vld [vmem:[#allocation2 + $0x8] sm:$0xf]
    %v44 = vld [vmem:[#allocation2 + $0xc] sm:$0xf]
    %v45 = vld [vmem:[#allocation2 + $0x10] sm:$0xf]
    %v46 = vld [vmem:[#allocation2 + $0x14] sm:$0xf]
    %v47 = vld [vmem:[#allocation2 + $0x18] sm:$0xf]
    %v48 = vld [vmem:[#allocation2 + $0x1c] sm:$0xf]
    %v49 = vld [vmem:[#allocation5] sm:$0xff]
    %v50 = vld [vmem:[#allocation5 + $0x8] sm:$0xff]
    %v51 = vld [vmem:[#allocation5 + $0x10] sm:$0xff]
    %v52 = vld [vmem:[#allocation5 + $0x18] sm:$0xff]
    %v53 = vld [vmem:[#allocation5 + $0x20] sm:$0xff]
    %v54 = vld [vmem:[#allocation5 + $0x28] sm:$0xff]
    %v55 = vld [vmem:[#allocation5 + $0x30] sm:$0xff]
    %v56 = vld [vmem:[#allocation5 + $0x38] sm:$0xff]
    %v57 = vld [vmem:[#allocation5 + $0x40] sm:$0xff]
    %v58 = vld [vmem:[#allocation5 + $0x48] sm:$0xff]
    %v59 = vld [vmem:[#allocation5 + $0x50] sm:$0xff]
    %v60 = vld [vmem:[#allocation5 + $0x58] sm:$0xff]
    %v61 = vld [vmem:[#allocation5 + $0x60] sm:$0xff]
    %v62 = vld [vmem:[#allocation5 + $0x68] sm:$0xff]
    %v63 = vld [vmem:[#allocation5 + $0x70] sm:$0xff]
    %v64 = vld [vmem:[#allocation5 + $0x78] sm:$0xff]
    %v73 = vunpack.c.l.b16 %v41
    %v74 = vunpack.c.l.b16 %v42
    %v75 = vunpack.c.l.b16 %v43
    %v76 = vunpack.c.l.b16 %v44
    %v77 = vunpack.c.l.b16 %v45
    %v78 = vunpack.c.l.b16 %v46
    %v79 = vunpack.c.l.b16 %v47
    %v80 = vunpack.c.l.b16 %v48
    %v81 = vpack.c.b16 %v74, %v73
    %v82 = vpack.c.b16 %v76, %v75
    %v83 = vpack.c.b16 %v78, %v77
    %v84 = vpack.c.b16 %v80, %v79
    %v105 = vunpack.c.l.b16 %v49
    %v106 = vunpack.c.h.b16 %v49
    %v107 = vunpack.c.l.b16 %v50
    %v108 = vunpack.c.h.b16 %v50
    %v109 = vunpack.c.l.b16 %v51
    %v110 = vunpack.c.h.b16 %v51
    %v111 = vunpack.c.l.b16 %v52
    %v112 = vunpack.c.h.b16 %v52
    %v113 = vunpack.c.l.b16 %v53
    %v114 = vunpack.c.h.b16 %v53
    %v115 = vunpack.c.l.b16 %v54
    %v116 = vunpack.c.h.b16 %v54
    %v117 = vunpack.c.l.b16 %v55
    %v118 = vunpack.c.h.b16 %v55
    %v119 = vunpack.c.l.b16 %v56
    %v120 = vunpack.c.h.b16 %v56
    %v121 = vunpack.c.l.b16 %v57
    %v122 = vunpack.c.h.b16 %v57
    %v123 = vunpack.c.l.b16 %v58
    %v124 = vunpack.c.h.b16 %v58
    %v125 = vunpack.c.l.b16 %v59
    %v126 = vunpack.c.h.b16 %v59
    %v127 = vunpack.c.l.b16 %v60
    %v128 = vunpack.c.h.b16 %v60
    %v129 = vunpack.c.l.b16 %v61
    %v130 = vunpack.c.h.b16 %v61
    %v131 = vunpack.c.l.b16 %v62
    %v132 = vunpack.c.h.b16 %v62
    %v133 = vunpack.c.l.b16 %v63
    %v134 = vunpack.c.h.b16 %v63
    %v135 = vunpack.c.l.b16 %v64
    %v136 = vunpack.c.h.b16 %v64
    %v137 = vpack.c.b16 %v107, %v105
    %v138 = vpack.c.b16 %v108, %v106
    %v139 = vpack.c.b16 %v111, %v109
    %v140 = vpack.c.b16 %v112, %v110
    %v141 = vpack.c.b16 %v115, %v113
    %v142 = vpack.c.b16 %v116, %v114
    %v143 = vpack.c.b16 %v119, %v117
    %v144 = vpack.c.b16 %v120, %v118
    %v145 = vpack.c.b16 %v123, %v121
    %v146 = vpack.c.b16 %v124, %v122
    %v147 = vpack.c.b16 %v127, %v125
    %v148 = vpack.c.b16 %v128, %v126
    %v149 = vpack.c.b16 %v131, %v129
    %v150 = vpack.c.b16 %v132, %v130
    %v151 = vpack.c.b16 %v135, %v133
    %v152 = vpack.c.b16 %v136, %v134
    %169 = vmatprep.subr.bf16.mxu0 %v152
    %170 = vmatpush1.bf16.msra.mxu0 %v151
    %171 = vmatprep.subr.bf16.mxu0 %v150
    %172 = vmatpush1.bf16.msra.mxu0 %v149
    %173 = vmatprep.subr.bf16.mxu0 %v148
    %174 = vmatpush1.bf16.msra.mxu0 %v147
    %175 = vmatprep.subr.bf16.mxu0 %v146
    %176 = vmatpush1.bf16.msra.mxu0 %v145
    %177 = vmatprep.subr.bf16.mxu0 %v144
    %178 = vmatpush1.bf16.msra.mxu0 %v143
    %179 = vmatprep.subr.bf16.mxu0 %v142
    %180 = vmatpush1.bf16.msra.mxu0 %v141
    %181 = vmatprep.subr.bf16.mxu0 %v140
    %182 = vmatpush1.bf16.msra.mxu0 %v139
    %183 = vmatprep.subr.bf16.mxu0 %v138
    %184 = vmatpush1.bf16.msra.mxu0 %v137
    %185 = vmatprep.subr.bf16.mxu0 0
    %186 = vmatpush2.bf16.msra.mxu0 0
    %187 = vmatprep.subr.bf16.mxu0 0
    %188 = vmatpush2.bf16.msra.mxu0 0
    %189 = vmatprep.subr.bf16.mxu0 0
    %190 = vmatpush2.bf16.msra.mxu0 0
    %191 = vmatprep.subr.bf16.mxu0 0
    %192 = vmatpush2.bf16.msra.mxu0 0
    %193 = vmatprep.subr.bf16.mxu0 0
    %194 = vmatpush2.bf16.msra.mxu0 0
    %195 = vmatprep.subr.bf16.mxu0 0
    %196 = vmatpush2.bf16.msra.mxu0 0
    %197 = vmatprep.subr.bf16.mxu0 0
    %198 = vmatpush2.bf16.msra.mxu0 0
    %199 = vmatprep.subr.bf16.mxu0 0
    %200 = vmatpush2.bf16.msra.mxu0 0
    %201 = vmatprep.mubr.bf16.mxu0 0
    %202 = vmatmul.mubr.bf16.gmra.mxu0 %v81
    %v203 = vpop.f32.mrf.mxu0
    %v204 = vadd.f32 0.0, %v203
    %v205 = vpop.f32.mrf.mxu0
    %v206 = vadd.f32 0.0, %v205
    %v207 = vpop.f32.mrf.mxu0
    %v208 = vadd.f32 0.0, %v207
    %v209 = vpop.f32.mrf.mxu0
    %v210 = vadd.f32 0.0, %v209
    %211 = vmatprep.mubr.bf16.mxu0 0
    %212 = vmatmul.mubr.bf16.gmra.mxu0 %v82
    %v213 = vpop.f32.mrf.mxu0
    %v214 = vadd.f32 0.0, %v213
    %v215 = vpop.f32.mrf.mxu0
    %v216 = vadd.f32 0.0, %v215
    %v217 = vpop.f32.mrf.mxu0
    %v218 = vadd.f32 0.0, %v217
    %v219 = vpop.f32.mrf.mxu0
    %v220 = vadd.f32 0.0, %v219
    %221 = vmatprep.mubr.bf16.mxu0 0
    %222 = vmatmul.mubr.bf16.gmra.mxu0 %v83
    %v223 = vpop.f32.mrf.mxu0
    %v224 = vadd.f32 0.0, %v223
    %v225 = vpop.f32.mrf.mxu0
    %v226 = vadd.f32 0.0, %v225
    %v227 = vpop.f32.mrf.mxu0
    %v228 = vadd.f32 0.0, %v227
    %v229 = vpop.f32.mrf.mxu0
    %v230 = vadd.f32 0.0, %v229
    %231 = vmatprep.mubr.bf16.mxu0 0
    %232 = vmatmul.mubr.bf16.gmra.mxu0 %v84
    %v233 = vpop.f32.mrf.mxu0
    %v234 = vadd.f32 0.0, %v233
    %v235 = vpop.f32.mrf.mxu0
    %v236 = vadd.f32 0.0, %v235
    %v237 = vpop.f32.mrf.mxu0
    %v238 = vadd.f32 0.0, %v237
    %v239 = vpop.f32.mrf.mxu0
    %v240 = vadd.f32 0.0, %v239
    %241 = vdwg.mxu0
    %v242 = vmul.f32 %v204, %v204
    %v243 = vmul.f32 %v208, %v208
    %v244 = vmul.f32 %v214, %v214
    %v245 = vmul.f32 %v218, %v218
    %v246 = vmul.f32 %v224, %v224
    %v247 = vmul.f32 %v228, %v228
    %v248 = vmul.f32 %v234, %v234
    %v249 = vmul.f32 %v238, %v238
    %v250 = vmul.f32 %v206, %v206
    %v251 = vmul.f32 %v210, %v210
    %v252 = vmul.f32 %v216, %v216
    %v253 = vmul.f32 %v220, %v220
    %v254 = vmul.f32 %v226, %v226
    %v255 = vmul.f32 %v230, %v230
    %v256 = vmul.f32 %v236, %v236
    %v257 = vmul.f32 %v240, %v240
    %v258 = vadd.f32 %v242, %v250
    %v259 = vadd.f32 %v243, %v251
    %v260 = vadd.f32 %v244, %v252
    %v261 = vadd.f32 %v245, %v253
    %v262 = vadd.f32 %v246, %v254
    %v263 = vadd.f32 %v247, %v255
    %v264 = vadd.f32 %v248, %v256
    %v265 = vadd.f32 %v249, %v257
    %v266 = vrsqrt.pop %v258
    %v267 = vmul.f32 %v258, %v266
    %vm268 = vcmp.eq.f32.partialorder %v258, inf
    %v269 = vsel %vm268, %v258, %v267
    %vm270 = vcmp.eq.f32.partialorder %v258, 0.0
    %v271 = vand.u32 %v258, 2147483648
    %v272 = vsel %vm270, %v271, %v269
    %v273 = vrsqrt.pop %v259
    %v274 = vmul.f32 %v259, %v273
    %vm275 = vcmp.eq.f32.partialorder %v259, inf
    %v276 = vsel %vm275, %v259, %v274
    %vm277 = vcmp.eq.f32.partialorder %v259, 0.0
    %v278 = vand.u32 %v259, 2147483648
    %v279 = vsel %vm277, %v278, %v276
    %v280 = vrsqrt.pop %v260
    %v281 = vmul.f32 %v260, %v280
    %vm282 = vcmp.eq.f32.partialorder %v260, inf
    %v283 = vsel %vm282, %v260, %v281
    %vm284 = vcmp.eq.f32.partialorder %v260, 0.0
    %v285 = vand.u32 %v260, 2147483648
    %v286 = vsel %vm284, %v285, %v283
    %v287 = vrsqrt.pop %v261
    %v288 = vmul.f32 %v261, %v287
    %vm289 = vcmp.eq.f32.partialorder %v261, inf
    %v290 = vsel %vm289, %v261, %v288
    %vm291 = vcmp.eq.f32.partialorder %v261, 0.0
    %v292 = vand.u32 %v261, 2147483648
    %v293 = vsel %vm291, %v292, %v290
    %v294 = vrsqrt.pop %v262
    %v295 = vmul.f32 %v262, %v294
    %vm296 = vcmp.eq.f32.partialorder %v262, inf
    %v297 = vsel %vm296, %v262, %v295
    %vm298 = vcmp.eq.f32.partialorder %v262, 0.0
    %v299 = vand.u32 %v262, 2147483648
    %v300 = vsel %vm298, %v299, %v297
    %v301 = vrsqrt.pop %v263
    %v302 = vmul.f32 %v263, %v301
    %vm303 = vcmp.eq.f32.partialorder %v263, inf
    %v304 = vsel %vm303, %v263, %v302
    %vm305 = vcmp.eq.f32.partialorder %v263, 0.0
    %v306 = vand.u32 %v263, 2147483648
    %v307 = vsel %vm305, %v306, %v304
    %v308 = vrsqrt.pop %v264
    %v309 = vmul.f32 %v264, %v308
    %vm310 = vcmp.eq.f32.partialorder %v264, inf
    %v311 = vsel %vm310, %v264, %v309
    %vm312 = vcmp.eq.f32.partialorder %v264, 0.0
    %v313 = vand.u32 %v264, 2147483648
    %v314 = vsel %vm312, %v313, %v311
    %v315 = vrsqrt.pop %v265
    %v316 = vmul.f32 %v265, %v315
    %vm317 = vcmp.eq.f32.partialorder %v265, inf
    %v318 = vsel %vm317, %v265, %v316
    %vm319 = vcmp.eq.f32.partialorder %v265, 0.0
    %v320 = vand.u32 %v265, 2147483648
    %v321 = vsel %vm319, %v320, %v318
    %322 = vst [vmem:[#allocation7] sm:$0xff] %v272
    %323 = vst [vmem:[#allocation7 + $0x8] sm:$0xff] %v279
    %324 = vst [vmem:[#allocation7 + $0x10] sm:$0xff] %v286
    %325 = vst [vmem:[#allocation7 + $0x18] sm:$0xff] %v293
    %326 = vst [vmem:[#allocation7 + $0x20] sm:$0xff] %v300
    %327 = vst [vmem:[#allocation7 + $0x28] sm:$0xff] %v307
    %328 = vst [vmem:[#allocation7 + $0x30] sm:$0xff] %v314
    %329 = vst [vmem:[#allocation7 + $0x38] sm:$0xff] %v321
    // Predicated region
    $region18: #{tpu_custom_call.1} parent=1 // pred_check
      _
    $region19: #{tpu_custom_call.1} parent=1 // pred_check_branch
      %331 = sbr.rel (0) target = $region21
    $region20: #{tpu_custom_call.1} parent=1 // pred_region
      %s333 = ssub.s32 1024, 1024
      %334 = vsyncadd [#allocation4], %s333
      %s335 = sshll.u32 [#allocation7], 4
      %s336 = int_to_ptr.vmem [resolvable:$true] %s335
      %341 = dma.vmem_to_hbm [thread:$0]  %s336, 1024, %s2, [#allocation4], 128, 128, 8
    $region21: #{tpu_custom_call.1} parent=1 // pred_fallthru
      _
    // Predicated region
    $region22: #{tpu_custom_call.1} parent=1 // pred_check
      _
    $region23: #{tpu_custom_call.1} parent=1 // pred_check_branch
      %343 = sbr.rel (0) target = $region25
    $region24: #{tpu_custom_call.1} parent=1 // pred_region
      %344 = dma.done [#allocation4], 1024
    $region25: #{tpu_custom_call.1} parent=1 // pred_fallthru
      _
    %345 = vsyncpa [#allocation3], 1
    %346 = vsyncpa [#allocation6], 1
    %347 = vsyncpa [#allocation4], 1

</llo_original>
